<compile_context>
chip_gen: v6e
topology: v6e:2x2x1
jax: 0.10.0
libtpu: 0.0.40
codegen_flags: <defaults>
</compile_context>

<pallas_src>
import functools

import jax
import jax.numpy as jnp
from jax.experimental import pallas as pl
from jax.experimental.pallas import tpu as pltpu


# ---------------------------------------------------------------------------
# Kernels
# ---------------------------------------------------------------------------

def _clam_kernel(y_ref, w1t_ref, b1_ref, w2t_ref, b2_ref, o_ref, *, inv_l):
    """Single-pass CLAM over a (bn, C, L) slab."""
    # First read: channel means as a lane-dense (bn, C) row matrix.
    pooled = jnp.sum(y_ref[...].astype(jnp.float32), axis=2) * inv_l        # (bn, C)

    # 1x1 Conv1d == channel matmul, batched over bn on the sublane axis.
    h = jnp.dot(pooled, w1t_ref[...], preferred_element_type=jnp.float32)
    h = jnp.maximum(h + b1_ref[...], 0.0)                                   # (bn, C/2)
    a = jnp.dot(h, w2t_ref[...], preferred_element_type=jnp.float32)
    a = jax.nn.sigmoid(a + b2_ref[...])                                     # (bn, C)

    # Re-read the slab instead of keeping the multi-MiB value live across the
    # excite path (keeps vreg/VMEM pressure minimal).
    o_ref[...] = (y_ref[...].astype(jnp.float32)
                  * (a[:, :, None] + 1.0)).astype(o_ref.dtype)


def _pool_kernel(y_ref, pooled_ref, *, inv_l):
    """L-tiled pass 1: accumulate per-(batch, channel) mean over L tiles."""
    li = pl.program_id(1)

    @pl.when(li == 0)
    def _():
        pooled_ref[...] = jnp.zeros_like(pooled_ref)

    pooled_ref[...] += jnp.sum(y_ref[...].astype(jnp.float32), axis=2)[:, None, :]

    @pl.when(li == pl.num_programs(1) - 1)
    def _():
        pooled_ref[...] = pooled_ref[...] * inv_l


def _scale_kernel(pooled_ref, w1t_ref, b1_ref, w2t_ref, b2_ref, y_ref, o_ref):
    """L-tiled pass 2: tiny excite (recomputed per tile) + broadcast scale."""
    pooled = pooled_ref[0]                                                   # (1, C)
    h = jnp.dot(pooled, w1t_ref[...], preferred_element_type=jnp.float32)
    h = jnp.maximum(h + b1_ref[...], 0.0)                                    # (1, C/2)
    a = jnp.dot(h, w2t_ref[...], preferred_element_type=jnp.float32)
    a = jax.nn.sigmoid(a + b2_ref[...])                                      # (1, C)
    o_ref[...] = (y_ref[...].astype(jnp.float32)
                  * (a[:, :, None] + 1.0)).astype(o_ref.dtype)


# ---------------------------------------------------------------------------
# Block / VMEM sizing helpers
# ---------------------------------------------------------------------------

def _vmem_capacity_bytes():
    try:
        info = pltpu.get_tpu_info()
        cap = getattr(info, "vmem_capacity_bytes", None)
        if cap:
            return int(cap)
    except Exception:
        pass
    return 64 << 20   # conservative: v7x has the smallest per-TC VMEM


def _vmem_limit(vmem_needed, vmem_cap):
    limit = min(max(vmem_needed, 32 << 20), vmem_cap - (2 << 20))
    return int(max(limit, vmem_needed))   # never below the computed requirement


def _pick_bn(n, cap):
    """Largest divisor of n <= cap; if that wastes >half the block budget,
    return cap itself and let a cdiv grid handle the partial last block."""
    cap = max(1, min(cap, n))
    best = 1
    d = 1
    while d * d <= n:
        if n % d == 0:
            for q in (d, n // d):
                if q <= cap and q > best:
                    best = q
        d += 1
    if 2 * best >= cap:
        return best
    return cap


def _pick_tl(l, c, bn, budget_bytes, itemsize):
    """Largest lane-aligned (multiple of 128) divisor of L fitting the budget."""
    max_tl = max(1, budget_bytes // max(bn * c * itemsize, 1))
    if l <= max_tl:
        return l
    t = (min(max_tl, l) // 128) * 128
    while t >= 128:
        if l % t == 0:
            return t
        t -= 128
    # TODO(synk): L has no lane-aligned divisor within the VMEM budget; fall
    # back to a minimal lane-aligned tile (or full L when not 128-aligned).
    return 128 if l % 128 == 0 else l


# ---------------------------------------------------------------------------
# Forward paths
# ---------------------------------------------------------------------------

def _clam_single_pass(y, w1t, b1r, w2t, b2r, *, target_block_bytes, vmem_cap,
                      weight_bytes):
    n, c, l = y.shape
    ch = w1t.shape[1]
    itemsize = jnp.dtype(y.dtype).itemsize
    per_batch_bytes = c * l * itemsize

    # How many batch rows per grid step: fill the block budget, but keep at
    # least ~4 grid steps (when N allows) so both v7x TensorCores get work.
    cap = max(1, target_block_bytes // max(per_batch_bytes, 1))
    min_grid_steps = 4 if n >= 4 else 1
    cap = min(cap, max(1, n // min_grid_steps), n)
    bn = _pick_bn(n, cap)
    grid_n = pl.cdiv(n, bn)

    block_bytes = bn * per_batch_bytes
    vmem_needed = 4 * block_bytes + 2 * weight_bytes + (2 << 20)
    vmem_limit = _vmem_limit(vmem_needed, vmem_cap)

    kernel = functools.partial(_clam_kernel, inv_l=float(1.0 / l))

    cost = pl.CostEstimate(
        flops=int(3 * n * c * l + 2 * n * (2 * c * ch)),   # pool + scale + 2 matmuls
        transcendentals=int(n * c),                         # sigmoid
        bytes_accessed=int(2 * n * c * l * itemsize),
    )

    return pl.pallas_call(
        kernel,
        out_shape=jax.ShapeDtypeStruct((n, c, l), y.dtype),
        grid_spec=pltpu.PrefetchScalarGridSpec(
            num_scalar_prefetch=0,
            grid=(grid_n,),
            in_specs=[
                pl.BlockSpec((bn, c, l), lambda i: (i, 0, 0)),   # Y slab
                pl.BlockSpec((c, ch), lambda i: (0, 0)),         # W1^T (resident)
                pl.BlockSpec((1, ch), lambda i: (0, 0)),         # b1 row
                pl.BlockSpec((ch, c), lambda i: (0, 0)),         # W2^T (resident)
                pl.BlockSpec((1, c), lambda i: (0, 0)),          # b2 row
            ],
            out_specs=pl.BlockSpec((bn, c, l), lambda i: (i, 0, 0)),
        ),
        compiler_params=pltpu.CompilerParams(
            dimension_semantics=("parallel",),
            vmem_limit_bytes=vmem_limit,
        ),
        cost_estimate=cost,
    )(y, w1t, b1r, w2t, b2r)


def _clam_two_pass(y, w1t, b1r, w2t, b2r, *, target_block_bytes, vmem_cap,
                   weight_bytes):
    """L-tiled two-pass path for per-batch slabs that exceed the block budget."""
    n, c, l = y.shape
    ch = w1t.shape[1]
    itemsize = jnp.dtype(y.dtype).itemsize

    bn = 1
    tl = _pick_tl(l, c, bn, target_block_bytes, itemsize)
    n_lt = pl.cdiv(l, tl)

    block_bytes = bn * c * tl * itemsize
    vmem_needed = 4 * block_bytes + 2 * weight_bytes + (4 << 20)
    vmem_limit = _vmem_limit(vmem_needed, vmem_cap)

    # Pass 1: pooled means, accumulated into a resident (1, 1, C) block.
    pooled = pl.pallas_call(
        functools.partial(_pool_kernel, inv_l=float(1.0 / l)),
        out_shape=jax.ShapeDtypeStruct((n, 1, c), jnp.float32),
        grid_spec=pltpu.PrefetchScalarGridSpec(
            num_scalar_prefetch=0,
            grid=(n, n_lt),
            in_specs=[pl.BlockSpec((bn, c, tl), lambda i, j: (i, 0, j))],
            out_specs=pl.BlockSpec((bn, 1, c), lambda i, j: (i, 0, 0)),
        ),
        compiler_params=pltpu.CompilerParams(
            dimension_semantics=("parallel", "arbitrary"),
            vmem_limit_bytes=vmem_limit,
        ),
    )(y)

    # Pass 2: excite (tiny, recomputed per tile) + broadcast scale over L tiles.
    return pl.pallas_call(
        _scale_kernel,
        out_shape=jax.ShapeDtypeStruct((n, c, l), y.dtype),
        grid_spec=pltpu.PrefetchScalarGridSpec(
            num_scalar_prefetch=0,
            grid=(n, n_lt),
            in_specs=[
                pl.BlockSpec((bn, 1, c), lambda i, j: (i, 0, 0)),   # pooled row
                pl.BlockSpec((c, ch), lambda i, j: (0, 0)),
                pl.BlockSpec((1, ch), lambda i, j: (0, 0)),
                pl.BlockSpec((ch, c), lambda i, j: (0, 0)),
                pl.BlockSpec((1, c), lambda i, j: (0, 0)),
                pl.BlockSpec((bn, c, tl), lambda i, j: (i, 0, j)),  # Y tile
            ],
            out_specs=pl.BlockSpec((bn, c, tl), lambda i, j: (i, 0, j)),
        ),
        compiler_params=pltpu.CompilerParams(
            dimension_semantics=("parallel", "parallel"),
            vmem_limit_bytes=vmem_limit,
        ),
    )(pooled, w1t, b1r, w2t, b2r, y)


def clam_forward(y, w1, b1, w2, b2, *, target_block_bytes=None):
    """CLAM forward.

    y: (N, C, L); w1: (C//2, C); b1: (C//2,); w2: (C, C//2); b2: (C,).
    """
    n, c, l = y.shape
    ch = w1.shape[0]
    itemsize = jnp.dtype(y.dtype).itemsize

    weight_bytes = int((w1.size + w2.size + b1.size + b2.size) * 4)
    vmem_cap = _vmem_capacity_bytes()

    if target_block_bytes is None:
        # Bigger blocks amortize the ~0.35us/step grid overhead; cap so that
        # 4x (double-buffered in + out) + weights fits the generation's VMEM.
        if vmem_cap >= (96 << 20):         # v5e / v6e: 128 MiB physical
            target_block_bytes = 20 << 20
        else:                              # v7x: 64 MiB per TensorCore
            target_block_bytes = 10 << 20

    # Lane-major parameters: transposed weights and (1, C)-shaped row biases.
    w1t = jnp.transpose(w1).astype(jnp.float32)    # (C, C//2)
    w2t = jnp.transpose(w2).astype(jnp.float32)    # (C//2, C)
    b1r = b1.reshape(1, ch).astype(jnp.float32)
    b2r = b2.reshape(1, c).astype(jnp.float32)

    per_batch_bytes = c * l * itemsize
    if per_batch_bytes <= target_block_bytes:
        return _clam_single_pass(y, w1t, b1r, w2t, b2r,
                                 target_block_bytes=target_block_bytes,
                                 vmem_cap=vmem_cap, weight_bytes=weight_bytes)
    return _clam_two_pass(y, w1t, b1r, w2t, b2r,
                          target_block_bytes=target_block_bytes,
                          vmem_cap=vmem_cap, weight_bytes=weight_bytes)


def clam_reference(y, w1, b1, w2, b2):
    pooled = jnp.mean(y.astype(jnp.float32), axis=2, keepdims=True)       # (N, C, 1)
    h = jnp.maximum(jnp.einsum("oc,ncl->nol", w1, pooled)
                    + b1[None, :, None], 0.0)                             # (N, C/2, 1)
    a = jax.nn.sigmoid(jnp.einsum("oc,ncl->nol", w2, h)
                       + b2[None, :, None])                               # (N, C, 1)
    return (a * y + y).astype(y.dtype)


if __name__ == "__main__":
    N, C, L = 2, 8, 128   # small shapes; C must be even

    key = jax.random.PRNGKey(0)
    k_y, k_w1, k_b1, k_w2, k_b2, k_y2, k_y3 = jax.random.split(key, 7)

    y = jax.random.normal(k_y, (N, C, L), dtype=jnp.float32)
    # Synthetic "Conv1d" parameters (kernel size 1 -> plain matrices).
    w1 = jax.random.normal(k_w1, (C // 2, C), dtype=jnp.float32) * 0.1
    b1 = jax.random.normal(k_b1, (C // 2,), dtype=jnp.float32) * 0.1
    w2 = jax.random.normal(k_w2, (C, C // 2), dtype=jnp.float32) * 0.1
    b2 = jax.random.normal(k_b2, (C,), dtype=jnp.float32) * 0.1

    # 1) Single-pass path, lane-aligned L.
    out = jax.block_until_ready(clam_forward(y, w1, b1, w2, b2))
    ref = clam_reference(y, w1, b1, w2, b2)
    assert out.shape == (N, C, L)
    assert jnp.allclose(out, ref, atol=1e-5, rtol=1e-5)

    # 2) Single-pass path, non-128-aligned L (pooled mean must ignore padding).
    L2 = 100
    y2 = jax.random.normal(k_y2, (N, C, L2), dtype=jnp.float32)
    out2 = jax.block_until_ready(clam_forward(y2, w1, b1, w2, b2))
    ref2 = clam_reference(y2, w1, b1, w2, b2)
    assert jnp.allclose(out2, ref2, atol=1e-5, rtol=1e-5)

    # 3) Two-pass (L-tiled) path, forced via a tiny block budget.
    L3 = 256
    y3 = jax.random.normal(k_y3, (N, C, L3), dtype=jnp.float32)
    out3 = jax.block_until_ready(
        clam_forward(y3, w1, b1, w2, b2, target_block_bytes=4096))
    ref3 = clam_reference(y3, w1, b1, w2, b2)
    assert jnp.allclose(out3, ref3, atol=1e-5, rtol=1e-5)

    print("KERNEL_OK")
</pallas_src>

<mosaic_0001>
module attributes {stable_mosaic.version = 11 : i64} {
  func.func @_clam_kernel(%arg0: i32, %arg1: memref<2x8x128xf32, #tpu.memory_space<vmem>>, %arg2: memref<8x4xf32, #tpu.memory_space<vmem>>, %arg3: memref<1x4xf32, #tpu.memory_space<vmem>>, %arg4: memref<4x8xf32, #tpu.memory_space<vmem>>, %arg5: memref<1x8xf32, #tpu.memory_space<vmem>>, %arg6: memref<2x8x128xf32, #tpu.memory_space<vmem>>) attributes {dimension_semantics = [#tpu.dimension_semantics<parallel>], iteration_bounds = array<i64: 1>, scalar_prefetch = 0 : i64, scratch_operands = 0 : i64, tpu.core_type = #tpu.core_type<tc>, window_params = [{transform_indices = @transform_0, window_bounds = array<i64: 2, 8, 128>}, {pipeline_mode = #tpu.pipeline_mode<synchronous>, transform_indices = @transform_1, window_bounds = array<i64: 8, 4>}, {pipeline_mode = #tpu.pipeline_mode<synchronous>, transform_indices = @transform_2, window_bounds = array<i64: 1, 4>}, {pipeline_mode = #tpu.pipeline_mode<synchronous>, transform_indices = @transform_3, window_bounds = array<i64: 4, 8>}, {pipeline_mode = #tpu.pipeline_mode<synchronous>, transform_indices = @transform_4, window_bounds = array<i64: 1, 8>}, {transform_indices = @transform_5, window_bounds = array<i64: 2, 8, 128>}]} {
    %c0 = arith.constant 0 : index
    %c0_0 = arith.constant 0 : index
    %c0_1 = arith.constant 0 : index
    %0 = vector.load %arg1[%c0, %c0_0, %c0_1] : memref<2x8x128xf32, #tpu.memory_space<vmem>>, vector<2x8x128xf32>
    %cst = arith.constant dense<0.000000e+00> : vector<2x8xf32>
    %1 = vector.multi_reduction <add>, %0, %cst [2] : vector<2x8x128xf32> to vector<2x8xf32>
    %cst_2 = arith.constant 7.812500e-03 : f32
    %2 = vector.broadcast %cst_2 : f32 to vector<2x8xf32>
    %3 = arith.mulf %1, %2 : vector<2x8xf32>
    %c0_3 = arith.constant 0 : index
    %c0_4 = arith.constant 0 : index
    %4 = vector.load %arg2[%c0_3, %c0_4] : memref<8x4xf32, #tpu.memory_space<vmem>>, vector<8x4xf32>
    %cst_5 = arith.constant dense<0.000000e+00> : vector<2x4xf32>
    %5 = tpu.matmul %3, %4, %cst_5 {dimension_numbers = #tpu.dot_dimension_numbers<[1], [0], [0], [1], [0, 0, 1, 1], [], []>} : vector<2x8xf32>, vector<8x4xf32>, vector<2x4xf32> -> vector<2x4xf32>
    %c0_6 = arith.constant 0 : index
    %c0_7 = arith.constant 0 : index
    %6 = vector.load %arg3[%c0_6, %c0_7] : memref<1x4xf32, #tpu.memory_space<vmem>>, vector<1x4xf32>
    %7 = vector.broadcast %6 : vector<1x4xf32> to vector<2x4xf32>
    %8 = arith.addf %5, %7 : vector<2x4xf32>
    %cst_8 = arith.constant 0.000000e+00 : f32
    %9 = vector.broadcast %cst_8 : f32 to vector<2x4xf32>
    %10 = arith.maximumf %8, %9 : vector<2x4xf32>
    %c0_9 = arith.constant 0 : index
    %c0_10 = arith.constant 0 : index
    %11 = vector.load %arg4[%c0_9, %c0_10] : memref<4x8xf32, #tpu.memory_space<vmem>>, vector<4x8xf32>
    %cst_11 = arith.constant dense<0.000000e+00> : vector<2x8xf32>
    %12 = tpu.matmul %10, %11, %cst_11 {dimension_numbers = #tpu.dot_dimension_numbers<[1], [0], [0], [1], [0, 0, 1, 1], [], []>} : vector<2x4xf32>, vector<4x8xf32>, vector<2x8xf32> -> vector<2x8xf32>
    %c0_12 = arith.constant 0 : index
    %c0_13 = arith.constant 0 : index
    %13 = vector.load %arg5[%c0_12, %c0_13] : memref<1x8xf32, #tpu.memory_space<vmem>>, vector<1x8xf32>
    %14 = vector.broadcast %13 : vector<1x8xf32> to vector<2x8xf32>
    %15 = arith.addf %12, %14 : vector<2x8xf32>
    %16 = arith.negf %15 : vector<2x8xf32>
    %17 = math.exp %16 : vector<2x8xf32>
    %cst_14 = arith.constant 1.000000e+00 : f32
    %18 = vector.broadcast %cst_14 : f32 to vector<2x8xf32>
    %19 = arith.addf %18, %17 : vector<2x8xf32>
    %20 = arith.divf %18, %19 : vector<2x8xf32>
    %c0_15 = arith.constant 0 : index
    %c0_16 = arith.constant 0 : index
    %c0_17 = arith.constant 0 : index
    %21 = vector.load %arg1[%c0_15, %c0_16, %c0_17] : memref<2x8x128xf32, #tpu.memory_space<vmem>>, vector<2x8x128xf32>
    %22 = vector.shape_cast %20 : vector<2x8xf32> to vector<2x8x1xf32>
    %cst_18 = arith.constant 1.000000e+00 : f32
    %23 = vector.broadcast %cst_18 : f32 to vector<2x8x1xf32>
    %24 = arith.addf %22, %23 : vector<2x8x1xf32>
    %25 = vector.broadcast %24 : vector<2x8x1xf32> to vector<2x8x128xf32>
    %26 = arith.mulf %21, %25 : vector<2x8x128xf32>
    %c0_19 = arith.constant 0 : index
    %c0_20 = arith.constant 0 : index
    %c0_21 = arith.constant 0 : index
    %27 = vector.load %arg6[%c0_19, %c0_20, %c0_21] : memref<2x8x128xf32, #tpu.memory_space<vmem>>, vector<2x8x128xf32>
    tpu.vector_store %arg6[%c0_19, %c0_20, %c0_21], %26 {strides = array<i32>} : memref<2x8x128xf32, #tpu.memory_space<vmem>>, vector<2x8x128xf32>,
    return
  }
  func.func @transform_0(%arg0: i32) -> (i32, i32, i32) {
    %c0_i32 = arith.constant 0 : i32
    %c0_i32_0 = arith.constant 0 : i32
    %c0_i32_1 = arith.constant 0 : i32
    return %arg0, %c0_i32, %c0_i32_0 : i32, i32, i32
  }
  func.func @transform_1(%arg0: i32) -> (i32, i32) {
    %c0_i32 = arith.constant 0 : i32
    %c0_i32_0 = arith.constant 0 : i32
    %c0_i32_1 = arith.constant 0 : i32
    return %c0_i32, %c0_i32_0 : i32, i32
  }
  func.func @transform_2(%arg0: i32) -> (i32, i32) {
    %c0_i32 = arith.constant 0 : i32
    %c0_i32_0 = arith.constant 0 : i32
    %c0_i32_1 = arith.constant 0 : i32
    return %c0_i32, %c0_i32_0 : i32, i32
  }
  func.func @transform_3(%arg0: i32) -> (i32, i32) {
    %c0_i32 = arith.constant 0 : i32
    %c0_i32_0 = arith.constant 0 : i32
    %c0_i32_1 = arith.constant 0 : i32
    return %c0_i32, %c0_i32_0 : i32, i32
  }
  func.func @transform_4(%arg0: i32) -> (i32, i32) {
    %c0_i32 = arith.constant 0 : i32
    %c0_i32_0 = arith.constant 0 : i32
    %c0_i32_1 = arith.constant 0 : i32
    return %c0_i32, %c0_i32_0 : i32, i32
  }
  func.func @transform_5(%arg0: i32) -> (i32, i32, i32) {
    %c0_i32 = arith.constant 0 : i32
    %c0_i32_0 = arith.constant 0 : i32
    %c0_i32_1 = arith.constant 0 : i32
    return %arg0, %c0_i32, %c0_i32_0 : i32, i32, i32
  }
}

</mosaic_0001>

<llo_original>
// kernel: tpu_custom_call.1
$region0: #{tpu_custom_call.1}
  #allocation0 [shape = 'u32[]', space=smem, size = 0x4, offset = 0x4, fixed_abs, tag = 'smem constant byte address 0x4 - core index']
  #allocation1 [shape = 'u32[144,128]{1,0:T(1,128)}', space=vmem, size = 0x12000, scoped, tag = 'internal scratch']
  %s0 = inlined_call_operand.hbm [shape: f32[2,8,128], index: 0, kind: input, shape index: {}]
  %s1 = inlined_call_operand.vmem [shape: f32[8,4], index: 1, kind: input, shape index: {}]
  %s2 = inlined_call_operand.vmem [shape: f32[1,4], index: 2, kind: input, shape index: {}]
  %s3 = inlined_call_operand.vmem [shape: f32[4,8], index: 3, kind: input, shape index: {}]
  %s4 = inlined_call_operand.vmem [shape: f32[1,8], index: 4, kind: input, shape index: {}]
  %s5 = inlined_call_operand.hbm [shape: f32[2,8,128], index: 5, kind: output, shape index: {}]
  %s6 = sld [smem:[#allocation0]]
  $region34: #{tpu_custom_call.1} parent=0
    _
  %s8 = ssub.s32 1, %s6
  %s9 = scalar_select 0, %s8, %s6
  $region1: #{tpu_custom_call.1} parent=0
    #allocation2 [shape = 'u8[8192]{0}', space=vmem, size = 0x2000, scoped, tag = 'input window, operand 0, single buffered']
    #allocation3 [shape = 's32[1]{0}', space=sflag, size = 0x4, scoped, tag = 'scoped memory for tpu_custom_call.1']
    #allocation4 [shape = 's32[1]{0}', space=sflag, size = 0x4, scoped, tag = 'scoped memory for tpu_custom_call.1']
    #allocation5 [shape = 'u8[8192]{0}', space=vmem, size = 0x2000, scoped, tag = 'output window, operand 0, single buffered']
    %10 = vsyncpa [#allocation3], 0
    %11 = vsyncpa [#allocation4], 0
    // Predicated region
    $region2: #{tpu_custom_call.1} parent=1 // pred_check
      _
    $region3: #{tpu_custom_call.1} parent=1 // pred_check_branch
      %13 = sbr.rel (0) target = $region5
    $region4: #{tpu_custom_call.1} parent=1 // pred_region
      %s15 = ssub.s32 256, 256
      %16 = vsyncadd [#allocation3], %s15
      %s17 = sshll.u32 [#allocation2], 4
      %s18 = int_to_ptr.vmem [resolvable:$true] %s17
      %23 = dma.hbm_to_vmem [thread:$0]  %s0, 256, %s18, [#allocation3], 128, 128, 8
    $region5: #{tpu_custom_call.1} parent=1 // pred_fallthru
      _
    // Predicated region
    $region6: #{tpu_custom_call.1} parent=1 // pred_check
      _
    $region7: #{tpu_custom_call.1} parent=1 // pred_check_branch
      %25 = sbr.rel (0) target = $region9
    $region8: #{tpu_custom_call.1} parent=1 // pred_region
      _
    $region9: #{tpu_custom_call.1} parent=1 // pred_fallthru
      _
    // Predicated region
    $region10: #{tpu_custom_call.1} parent=1 // pred_check
      _
    $region11: #{tpu_custom_call.1} parent=1 // pred_check_branch
      %27 = sbr.rel (0) target = $region13
    $region12: #{tpu_custom_call.1} parent=1 // pred_region
      _
    $region13: #{tpu_custom_call.1} parent=1 // pred_fallthru
      _
    // Predicated region
    $region14: #{tpu_custom_call.1} parent=1 // pred_check
      _
    $region15: #{tpu_custom_call.1} parent=1 // pred_check_branch
      %29 = sbr.rel (0) target = $region17
    $region16: #{tpu_custom_call.1} parent=1 // pred_region
      _
    $region17: #{tpu_custom_call.1} parent=1 // pred_fallthru
      _
    // Predicated region
    $region18: #{tpu_custom_call.1} parent=1 // pred_check
      _
    $region19: #{tpu_custom_call.1} parent=1 // pred_check_branch
      %31 = sbr.rel (0) target = $region21
    $region20: #{tpu_custom_call.1} parent=1 // pred_region
      _
    $region21: #{tpu_custom_call.1} parent=1 // pred_fallthru
      _
    // Predicated region
    $region22: #{tpu_custom_call.1} parent=1 // pred_check
      _
    $region23: #{tpu_custom_call.1} parent=1 // pred_check_branch
      %33 = sbr.rel (0) target = $region25
    $region24: #{tpu_custom_call.1} parent=1 // pred_region
      %34 = dma.done [#allocation3], 256
    $region25: #{tpu_custom_call.1} parent=1 // pred_fallthru
      _
    %v35 = vld [vmem:[#allocation2] sm:$0xff]
    %v36 = vld [vmem:[#allocation2 + $0x8] sm:$0xff]
    %37 = vadd.xlane.f32.xlu0 %v35
    %v38 = vpop.xlane.xlu0 %37
    %39 = vadd.xlane.f32.xlu0 %v36
    %v40 = vpop.xlane.xlu0 %39
    %v41 = vmul.f32 %v38, 0.0078125
    %v42 = vmul.f32 %v40, 0.0078125
    %v43 = vld [vmem:[%s1] sm:$0xff]
    %v44 = vld [vmem:[%s2] sm:$0x1]
    %v46 = vlaneseq
    %v47 = vshrl.u32 %v46, 7
    %v48 = vsub.s32 0, %v47
    %v49 = vrot.slane %v44, %v48
    %v53 = vlaneseq
    %v54 = vand.u32 %v53, 127
    %v55 = vlaneseq
    %v56 = vshrl.u32 %v55, 7
    %v57 = vsub.s32 %v54, %v56
    %v58 = vrot.slane %v41, %v57
    %v59 = vlaneseq
    %v60 = vshrl.u32 %v59, 7
    %v61 = vsub.s32 %v54, %v60
    %v62 = vrot.slane %v42, %v61
    %vm63 = vcmask 1041409
    %v64 = vsel %vm63, %v62, %v58
    %vm65 = vcmask 64512
    %v66 = vsel %vm65, %v64, 0
    %68 = vmatprep.subr.mxu0 0.0
    %69 = vmatpush1.msra.mxu0 0.0
    %70 = vmatprep.subr.mxu0 0.0
    %71 = vmatpush1.msra.mxu0 0.0
    %72 = vmatprep.subr.mxu0 0.0
    %73 = vmatpush1.msra.mxu0 0.0
    %74 = vmatprep.subr.mxu0 0.0
    %75 = vmatpush1.msra.mxu0 0.0
    %76 = vmatprep.subr.mxu0 0.0
    %77 = vmatpush1.msra.mxu0 0.0
    %78 = vmatprep.subr.mxu0 0.0
    %79 = vmatpush1.msra.mxu0 0.0
    %80 = vmatprep.subr.mxu0 0.0
    %81 = vmatpush1.msra.mxu0 0.0
    %82 = vmatprep.subr.mxu0 0.0
    %83 = vmatpush1.msra.mxu0 0.0
    %84 = vmatprep.subr.mxu0 0.0
    %85 = vmatpush1.msra.mxu0 0.0
    %86 = vmatprep.subr.mxu0 0.0
    %87 = vmatpush1.msra.mxu0 0.0
    %88 = vmatprep.subr.mxu0 0.0
    %89 = vmatpush1.msra.mxu0 0.0
    %90 = vmatprep.subr.mxu0 0.0
    %91 = vmatpush1.msra.mxu0 0.0
    %92 = vmatprep.subr.mxu0 0.0
    %93 = vmatpush1.msra.mxu0 0.0
    %94 = vmatprep.subr.mxu0 0.0
    %95 = vmatpush1.msra.mxu0 0.0
    %96 = vmatprep.subr.mxu0 0.0
    %97 = vmatpush1.msra.mxu0 0.0
    %98 = vmatprep.subr.mxu0 0.0
    %99 = vmatpush1.msra.mxu0 %v43
    %100 = vmatprep.subr.mxu0 0.0
    %101 = vmatpush2.msra.mxu0 0.0
    %102 = vmatprep.subr.mxu0 0.0
    %103 = vmatpush2.msra.mxu0 0.0
    %104 = vmatprep.subr.mxu0 0.0
    %105 = vmatpush2.msra.mxu0 0.0
    %106 = vmatprep.subr.mxu0 0.0
    %107 = vmatpush2.msra.mxu0 0.0
    %108 = vmatprep.subr.mxu0 0.0
    %109 = vmatpush2.msra.mxu0 0.0
    %110 = vmatprep.subr.mxu0 0.0
    %111 = vmatpush2.msra.mxu0 0.0
    %112 = vmatprep.subr.mxu0 0.0
    %113 = vmatpush2.msra.mxu0 0.0
    %114 = vmatprep.subr.mxu0 0.0
    %115 = vmatpush2.msra.mxu0 0.0
    %116 = vmatprep.subr.mxu0 0.0
    %117 = vmatpush2.msra.mxu0 0.0
    %118 = vmatprep.subr.mxu0 0.0
    %119 = vmatpush2.msra.mxu0 0.0
    %120 = vmatprep.subr.mxu0 0.0
    %121 = vmatpush2.msra.mxu0 0.0
    %122 = vmatprep.subr.mxu0 0.0
    %123 = vmatpush2.msra.mxu0 0.0
    %124 = vmatprep.subr.mxu0 0.0
    %125 = vmatpush2.msra.mxu0 0.0
    %126 = vmatprep.subr.mxu0 0.0
    %127 = vmatpush2.msra.mxu0 0.0
    %128 = vmatprep.subr.mxu0 0.0
    %129 = vmatpush2.msra.mxu0 0.0
    %130 = vmatprep.subr.mxu0 0.0
    %131 = vmatpush2.msra.mxu0 0.0
    %132 = vmatprep.mubr.f32.mxu0 0.0
    %133 = vmatmul.mubr.f32.gmra.mxu0 %v66
    %v134 = vpop.f32.mrf.mxu0
    %v135 = vadd.f32 %v49, %v134
    %v136 = vpop.f32.mrf.mxu0
    %137 = vdwg.mxu0
    %v138 = vmax.f32 %v135, 0.0
    %v139 = vld [vmem:[%s3] sm:$0xf]
    %v140 = vld [vmem:[%s4] sm:$0x1]
    %v142 = vlaneseq
    %v143 = vshrl.u32 %v142, 7
    %v144 = vsub.s32 0, %v143
    %v145 = vrot.slane %v140, %v144
    %vm147 = vcmask 31744
    %v149 = vsel %vm147, %v138, 0
    %vm151 = vcmask 1043456
    %v153 = vsel %vm151, %v139, 0
    %155 = vmatprep.subr.mxu0 0.0
    %156 = vmatpush1.msra.mxu0 0.0
    %157 = vmatprep.subr.mxu0 0.0
    %158 = vmatpush1.msra.mxu0 0.0
    %159 = vmatprep.subr.mxu0 0.0
    %160 = vmatpush1.msra.mxu0 0.0
    %161 = vmatprep.subr.mxu0 0.0
    %162 = vmatpush1.msra.mxu0 0.0
    %163 = vmatprep.subr.mxu0 0.0
    %164 = vmatpush1.msra.mxu0 0.0
    %165 = vmatprep.subr.mxu0 0.0
    %166 = vmatpush1.msra.mxu0 0.0
    %167 = vmatprep.subr.mxu0 0.0
    %168 = vmatpush1.msra.mxu0 0.0
    %169 = vmatprep.subr.mxu0 0.0
    %170 = vmatpush1.msra.mxu0 0.0
    %171 = vmatprep.subr.mxu0 0.0
    %172 = vmatpush1.msra.mxu0 0.0
    %173 = vmatprep.subr.mxu0 0.0
    %174 = vmatpush1.msra.mxu0 0.0
    %175 = vmatprep.subr.mxu0 0.0
    %176 = vmatpush1.msra.mxu0 0.0
    %177 = vmatprep.subr.mxu0 0.0
    %178 = vmatpush1.msra.mxu0 0.0
    %179 = vmatprep.subr.mxu0 0.0
    %180 = vmatpush1.msra.mxu0 0.0
    %181 = vmatprep.subr.mxu0 0.0
    %182 = vmatpush1.msra.mxu0 0.0
    %183 = vmatprep.subr.mxu0 0.0
    %184 = vmatpush1.msra.mxu0 0.0
    %185 = vmatprep.subr.mxu0 0.0
    %186 = vmatpush1.msra.mxu0 %v153
    %187 = vmatprep.subr.mxu0 0.0
    %188 = vmatpush2.msra.mxu0 0.0
    %189 = vmatprep.subr.mxu0 0.0
    %190 = vmatpush2.msra.mxu0 0.0
    %191 = vmatprep.subr.mxu0 0.0
    %192 = vmatpush2.msra.mxu0 0.0
    %193 = vmatprep.subr.mxu0 0.0
    %194 = vmatpush2.msra.mxu0 0.0
    %195 = vmatprep.subr.mxu0 0.0
    %196 = vmatpush2.msra.mxu0 0.0
    %197 = vmatprep.subr.mxu0 0.0
    %198 = vmatpush2.msra.mxu0 0.0
    %199 = vmatprep.subr.mxu0 0.0
    %200 = vmatpush2.msra.mxu0 0.0
    %201 = vmatprep.subr.mxu0 0.0
    %202 = vmatpush2.msra.mxu0 0.0
    %203 = vmatprep.subr.mxu0 0.0
    %204 = vmatpush2.msra.mxu0 0.0
    %205 = vmatprep.subr.mxu0 0.0
    %206 = vmatpush2.msra.mxu0 0.0
    %207 = vmatprep.subr.mxu0 0.0
    %208 = vmatpush2.msra.mxu0 0.0
    %209 = vmatprep.subr.mxu0 0.0
    %210 = vmatpush2.msra.mxu0 0.0
    %211 = vmatprep.subr.mxu0 0.0
    %212 = vmatpush2.msra.mxu0 0.0
    %213 = vmatprep.subr.mxu0 0.0
    %214 = vmatpush2.msra.mxu0 0.0
    %215 = vmatprep.subr.mxu0 0.0
    %216 = vmatpush2.msra.mxu0 0.0
    %217 = vmatprep.subr.mxu0 0.0
    %218 = vmatpush2.msra.mxu0 0.0
    %219 = vmatprep.mubr.f32.mxu0 0.0
    %220 = vmatmul.mubr.f32.gmra.mxu0 %v149
    %v221 = vpop.f32.mrf.mxu0
    %v222 = vadd.f32 %v145, %v221
    %v223 = vpop.f32.mrf.mxu0
    %224 = vdwg.mxu0
    %v225 = vxor.u32 %v222, 2147483648
    %v226 = vmul.f32 %v225, 1.442695
    %v227 = vpow.pop %v226
    %v228 = vadd.f32 %v227, 1.0
    %v229 = vrcp.pop %v228
    %v230 = vmul.f32 1.0, %v229
    %v231 = vlaneseq
    %v232 = vshrl.u32 %v231, 7
    %v233 = vsub.s32 0, %v232
    %v234 = vrot.slane %v230, %v233
    %236 = vbcast.lane.b32.xlu0 %v234, 256
    %v237 = vpop.permute.xlu0 %236
    %v238 = vlaneseq
    %v239 = vshrl.u32 %v238, 7
    %v240 = vsub.s32 1, %v239
    %v241 = vrot.slane %v230, %v240
    %243 = vbcast.lane.b32.xlu0 %v241, 256
    %v244 = vpop.permute.xlu0 %243
    %v245 = vadd.f32 %v237, 1.0
    %v246 = vadd.f32 %v244, 1.0
    %v247 = vmul.f32 %v35, %v245
    %v248 = vmul.f32 %v36, %v246
    %249 = vst [vmem:[#allocation5] sm:$0xff] %v247
    %250 = vst [vmem:[#allocation5 + $0x8] sm:$0xff] %v248
    // Predicated region
    $region26: #{tpu_custom_call.1} parent=1 // pred_check
      _
    $region27: #{tpu_custom_call.1} parent=1 // pred_check_branch
      %252 = sbr.rel (0) target = $region29
    $region28: #{tpu_custom_call.1} parent=1 // pred_region
      %s254 = ssub.s32 256, 256
      %255 = vsyncadd [#allocation4], %s254
      %s256 = sshll.u32 [#allocation5], 4
      %s257 = int_to_ptr.vmem [resolvable:$true] %s256
      %262 = dma.vmem_to_hbm [thread:$0]  %s257, 256, %s5, [#allocation4], 128, 128, 8
    $region29: #{tpu_custom_call.1} parent=1 // pred_fallthru
      _
    // Predicated region
    $region30: #{tpu_custom_call.1} parent=1 // pred_check
      _
    $region31: #{tpu_custom_call.1} parent=1 // pred_check_branch
      %264 = sbr.rel (0) target = $region33
    $region32: #{tpu_custom_call.1} parent=1 // pred_region
      %265 = dma.done [#allocation4], 256
    $region33: #{tpu_custom_call.1} parent=1 // pred_fallthru
      _
    %266 = vsyncpa [#allocation3], 1
    %267 = vsyncpa [#allocation4], 1

</llo_original>
